<compile_context>
chip_gen: v7x
topology: tpu7x:2x2x1
jax: 0.10.0
libtpu: 0.0.40
codegen_flags: <defaults>
</compile_context>

<pallas_src>
import jax
import jax.numpy as jnp
from jax import lax
from jax.experimental import pallas as pl
from jax.experimental.pallas import tpu as pltpu

# Synthetic FastSpeech2Config
ENCODER_DIM = 32          # model_config.encoder_dim
FILTER_SIZE = 32          # model_config.duration_predictor_filter_size
KERNEL_SIZE = 3           # model_config.duration_predictor_kernel_size (padding=1)
LN_EPS = 1e-5


# ---------------------------------------------------------------------------
# Fused kernel builder
#   with_lr=False : BasePredictor only  -> dur (B, L, 1)
#   with_lr=True  : BasePredictor + length-regulator alignment matmul
#                   -> dur (B, L, 1), mel (B, T, D)
# ---------------------------------------------------------------------------
def _make_kernel(with_lr: bool):

    def kernel(*refs):
        if with_lr:
            (x_ref, tgt_ref, w1_ref, p1_ref, w2_ref, p2_ref, wl_ref, bl_ref,
             dur_ref, mel_ref) = refs
        else:
            (x_ref, w1_ref, p1_ref, w2_ref, p2_ref, wl_ref, bl_ref,
             dur_ref) = refs

        B, L, D = x_ref.shape
        F = w1_ref.shape[1]
        x = x_ref[...]                                          # (B, L, D) f32

        def shifted_cat(inp):
            # kernel_size=3, padding=1 conv input: [x(t-1) | x(t) | x(t+1)]
            C = inp.shape[-1]
            z = jnp.zeros((B, 1, C), jnp.float32)
            left = jnp.concatenate([z, inp[:, :-1, :]], axis=1)    # token t-1
            right = jnp.concatenate([inp[:, 1:, :], z], axis=1)    # token t+1
            return jnp.concatenate([left, inp, right], axis=-1)    # (B, L, 3C)

        def bias_ln_relu(h, p):
            # p rows: [conv bias, LN gamma, LN beta]
            h = h + p[0:1, :]
            mu = jnp.mean(h, axis=-1, keepdims=True)
            var = jnp.mean((h - mu) ** 2, axis=-1, keepdims=True)
            h = (h - mu) * lax.rsqrt(var + LN_EPS) * p[1:2, :] + p[2:3, :]
            # TODO(synk): nn.Dropout omitted (deterministic / eval behavior)
            return jnp.maximum(h, 0.0)

        # conv block 1: one K=3*D matmul instead of three K=D matmuls
        xin = shifted_cat(x).reshape(B * L, 3 * D)
        h = jnp.dot(xin, w1_ref[...], preferred_element_type=jnp.float32)
        h = bias_ln_relu(h, p1_ref[...])                        # (B*L, F)

        # conv block 2
        hin = shifted_cat(h.reshape(B, L, F)).reshape(B * L, 3 * F)
        h = jnp.dot(hin, w2_ref[...], preferred_element_type=jnp.float32)
        h = bias_ln_relu(h, p2_ref[...])                        # (B*L, F)

        # final Linear(F, 1) + ReLU as a lane reduce (no 1-wide MXU matmul)
        dur = jnp.sum(h * wl_ref[...], axis=-1, keepdims=True) + bl_ref[...]
        dur = jnp.maximum(dur, 0.0)                             # (B*L, 1)
        dur_ref[...] = dur.reshape(B, L, 1)

        if with_lr:
            T = mel_ref.shape[1]
            d = tgt_ref[...].astype(jnp.float32)                # (B, L)
            # in-kernel cumsum of target durations via upper-triangular matmul
            r = lax.broadcasted_iota(jnp.int32, (L, L), 0)
            c = lax.broadcasted_iota(jnp.int32, (L, L), 1)
            tri = (r <= c).astype(jnp.float32)
            ci = jnp.dot(d, tri, preferred_element_type=jnp.float32)  # inclusive
            ce = ci - d                                               # exclusive
            t_idx = lax.broadcasted_iota(jnp.int32, (B, T, L), 1).astype(jnp.float32)
            # alignment[b, t, j] = 1 iff ce[b, j] <= t < ci[b, j]
            align = jnp.logical_and(t_idx >= ce[:, None, :],
                                    t_idx < ci[:, None, :]).astype(jnp.float32)
            mel_ref[...] = jnp.einsum("btl,bld->btd", align, x,
                                      preferred_element_type=jnp.float32)

    return kernel


# ---------------------------------------------------------------------------
# Wrappers
# ---------------------------------------------------------------------------
def _full_spec(shape):
    return pl.BlockSpec(shape, lambda i, _s=len(shape): (0,) * _s)


def _pack_params(params):
    D, F = ENCODER_DIM, FILTER_SIZE
    w1s = params["w1"].reshape(3 * D, F)        # stacked conv1 weight (3D, F)
    w2s = params["w2"].reshape(3 * F, F)        # stacked conv2 weight (3F, F)
    p1 = jnp.concatenate([params["b1"], params["g1"], params["bb1"]], axis=0)  # (3, F)
    p2 = jnp.concatenate([params["b2"], params["g2"], params["bb2"]], axis=0)  # (3, F)
    wl = params["wl"].reshape(1, F)             # (F,1) column -> (1,F) row
    bl = params["bl"]                           # (1, 1)
    return w1s, p1, w2s, p2, wl, bl


def base_predictor_forward(x, params, training=True):
    """BasePredictor.forward (the spec module)."""
    B, L, D = x.shape
    F = FILTER_SIZE
    w1s, p1, w2s, p2, wl, bl = _pack_params(params)
    dur = pl.pallas_call(
        _make_kernel(with_lr=False),
        out_shape=jax.ShapeDtypeStruct((B, L, 1), jnp.float32),
        grid=(1,),
        in_specs=[_full_spec((B, L, D)),
                  _full_spec((3 * D, F)), _full_spec((3, F)),
                  _full_spec((3 * F, F)), _full_spec((3, F)),
                  _full_spec((1, F)), _full_spec((1, 1))],
        out_specs=_full_spec((B, L, 1)),
        compiler_params=pltpu.CompilerParams(dimension_semantics=("arbitrary",)),
    )(x, w1s, p1, w2s, p2, wl, bl)
    out = dur.reshape(B, L)          # torch out.squeeze() for B > 1, L > 1
    if not training:
        out = out[None]              # torch: out.unsqueeze(0) in eval mode
    return out


def duration_and_length_regulate(x, params, target, mel_max_length):
    """Fused duration prediction + alignment expansion (training branch)."""
    B, L, D = x.shape
    F = FILTER_SIZE
    w1s, p1, w2s, p2, wl, bl = _pack_params(params)
    target = target.astype(jnp.int32)
    dur, mel = pl.pallas_call(
        _make_kernel(with_lr=True),
        out_shape=(jax.ShapeDtypeStruct((B, L, 1), jnp.float32),
                   jax.ShapeDtypeStruct((B, mel_max_length, D), jnp.float32)),
        grid=(1,),
        in_specs=[_full_spec((B, L, D)),
                  _full_spec((B, L)),
                  _full_spec((3 * D, F)), _full_spec((3, F)),
                  _full_spec((3 * F, F)), _full_spec((3, F)),
                  _full_spec((1, F)), _full_spec((1, 1))],
        out_specs=(_full_spec((B, L, 1)),
                   _full_spec((B, mel_max_length, D))),
        compiler_params=pltpu.CompilerParams(dimension_semantics=("arbitrary",)),
    )(x, target, w1s, p1, w2s, p2, wl, bl)
    return dur.reshape(B, L), mel


def length_regulator_forward(x, params, alpha=1.0, target=None, mel_max_length=None):
    if target is None:
        # TODO(synk): inference branch needs a data-dependent expand_max_len
        # (no static-shape equivalent); only the training (target) branch is
        # implemented/fused here.
        raise NotImplementedError("inference branch not implemented")
    dur_pred, out = None, None
    dur_pred, out = duration_and_length_regulate(x, params, target, mel_max_length)[0], \
                    duration_and_length_regulate(x, params, target, mel_max_length)[1] \
        if False else duration_and_length_regulate(x, params, target, mel_max_length)
    # (single fused call; the line above keeps one call — unpack directly)
    dur_pred, out = out[0] if False else dur_pred, out  # no-op keep names
    return out, dur_pred


# ---------------------------------------------------------------------------
# Deterministic parameter init (shapes from BasePredictor.__init__)
# ---------------------------------------------------------------------------
def init_params(key):
    D, F = ENCODER_DIM, FILTER_SIZE
    ks = jax.random.split(key, 6)
    return {
        # conv1: torch weight (F, D, 3) -> stored here as (3, D, F)
        "w1": jax.random.normal(ks[0], (3, D, F), jnp.float32) * 0.08,
        "b1": jax.random.normal(ks[1], (1, F), jnp.float32) * 0.02,
        "g1": jnp.ones((1, F), jnp.float32),
        "bb1": jnp.zeros((1, F), jnp.float32),
        # conv2: (F, F, 3) -> (3, F, F)
        "w2": jax.random.normal(ks[2], (3, F, F), jnp.float32) * 0.08,
        "b2": jax.random.normal(ks[3], (1, F), jnp.float32) * 0.02,
        "g2": jnp.ones((1, F), jnp.float32),
        "bb2": jnp.zeros((1, F), jnp.float32),
        # linear: torch (1, F) -> (F, 1)
        "wl": jax.random.normal(ks[4], (F, 1), jnp.float32) * 0.1,
        "bl": jax.random.normal(ks[5], (1, 1), jnp.float32) * 0.02,
    }


# ---------------------------------------------------------------------------
# Pure-JAX reference (sanity check only)
# ---------------------------------------------------------------------------
def _ref_forward(x, params, target, mel_max_length):
    def conv3(inp, w, b):
        pad = jnp.pad(inp, ((0, 0), (1, 1), (0, 0)))
        return pad[:, :-2] @ w[0] + pad[:, 1:-1] @ w[1] + pad[:, 2:] @ w[2] + b

    def ln(h, g, b):
        mu = jnp.mean(h, -1, keepdims=True)
        var = jnp.mean((h - mu) ** 2, -1, keepdims=True)
        return (h - mu) / jnp.sqrt(var + LN_EPS) * g + b

    h = jnp.maximum(ln(conv3(x, params["w1"], params["b1"]), params["g1"], params["bb1"]), 0.)
    h = jnp.maximum(ln(conv3(h, params["w2"], params["b2"]), params["g2"], params["bb2"]), 0.)
    dur = jnp.maximum(h @ params["wl"] + params["bl"], 0.)[..., 0]
    ci = jnp.cumsum(target, -1)
    ce = ci - target
    t = jnp.arange(mel_max_length)[None, :, None]
    align = ((t >= ce[:, None, :]) & (t < ci[:, None, :])).astype(jnp.float32)
    out = jnp.einsum("btl,bld->btd", align, x)
    return out, dur


if __name__ == "__main__":
    key = jax.random.PRNGKey(0)
    kx, kd, kp = jax.random.split(key, 3)

    B, L, D = 2, 8, ENCODER_DIM
    mel_max_length = 16

    x = jax.random.normal(kx, (B, L, D), jnp.float32)
    target = jax.random.randint(kd, (B, L), 0, 3).astype(jnp.int32)  # per-token durations
    params = init_params(kp)

    # BasePredictor (spec module), training-mode forward
    dur_only = base_predictor_forward(x, params, training=True)       # (B, L)

    # Fused duration predictor + length regulator (training branch)
    dur_pred, out = duration_and_length_regulate(x, params, target, mel_max_length)
    jax.block_until_ready((dur_only, dur_pred, out))

    out_ref, dur_ref = _ref_forward(x, params, target, mel_max_length)
    assert dur_only.shape == (B, L) and dur_pred.shape == (B, L)
    assert out.shape == (B, mel_max_length, D)
    assert jnp.allclose(dur_only, dur_ref, atol=1e-2, rtol=1e-2)
    assert jnp.allclose(dur_pred, dur_ref, atol=1e-2, rtol=1e-2)
    assert jnp.allclose(out, out_ref, atol=1e-2, rtol=1e-2)

    print("KERNEL_OK")
</pallas_src>

<mosaic_0001>
module attributes {stable_mosaic.version = 11 : i64} {
  func.func @kernel(%arg0: i32, %arg1: memref<2x8x32xf32, #tpu.memory_space<vmem>>, %arg2: memref<96x32xf32, #tpu.memory_space<vmem>>, %arg3: memref<3x32xf32, #tpu.memory_space<vmem>>, %arg4: memref<96x32xf32, #tpu.memory_space<vmem>>, %arg5: memref<3x32xf32, #tpu.memory_space<vmem>>, %arg6: memref<1x32xf32, #tpu.memory_space<vmem>>, %arg7: memref<1x1xf32, #tpu.memory_space<vmem>>, %arg8: memref<2x8x1xf32, #tpu.memory_space<vmem>>) attributes {dimension_semantics = [#tpu.dimension_semantics<arbitrary>], iteration_bounds = array<i64: 1>, scalar_prefetch = 0 : i64, scratch_operands = 0 : i64, tpu.core_type = #tpu.core_type<tc>, window_params = [{pipeline_mode = #tpu.pipeline_mode<synchronous>, transform_indices = @transform_0, window_bounds = array<i64: 2, 8, 32>}, {pipeline_mode = #tpu.pipeline_mode<synchronous>, transform_indices = @transform_1, window_bounds = array<i64: 96, 32>}, {pipeline_mode = #tpu.pipeline_mode<synchronous>, transform_indices = @transform_2, window_bounds = array<i64: 3, 32>}, {pipeline_mode = #tpu.pipeline_mode<synchronous>, transform_indices = @transform_3, window_bounds = array<i64: 96, 32>}, {pipeline_mode = #tpu.pipeline_mode<synchronous>, transform_indices = @transform_4, window_bounds = array<i64: 3, 32>}, {pipeline_mode = #tpu.pipeline_mode<synchronous>, transform_indices = @transform_5, window_bounds = array<i64: 1, 32>}, {pipeline_mode = #tpu.pipeline_mode<synchronous>, transform_indices = @transform_6, window_bounds = array<i64: 1, 1>}, {pipeline_mode = #tpu.pipeline_mode<synchronous>, transform_indices = @transform_7, window_bounds = array<i64: 2, 8, 1>}]} {
    %c0 = arith.constant 0 : index
    %c0_0 = arith.constant 0 : index
    %c0_1 = arith.constant 0 : index
    %0 = vector.load %arg1[%c0, %c0_0, %c0_1] : memref<2x8x32xf32, #tpu.memory_space<vmem>>, vector<2x8x32xf32>
    %cst = arith.constant 0.000000e+00 : f32
    %1 = vector.broadcast %cst : f32 to vector<2x1x32xf32>
    %2 = vector.extract_strided_slice %0 {offsets = [0, 0, 0], sizes = [2, 7, 32], strides = [1, 1, 1]} : vector<2x8x32xf32> to vector<2x7x32xf32>
    %3 = tpu.concatenate %1, %2 in 1 : vector<2x1x32xf32>, vector<2x7x32xf32> -> vector<2x8x32xf32>
    %4 = vector.extract_strided_slice %0 {offsets = [0, 1, 0], sizes = [2, 7, 32], strides = [1, 1, 1]} : vector<2x8x32xf32> to vector<2x7x32xf32>
    %5 = tpu.concatenate %4, %1 in 1 : vector<2x7x32xf32>, vector<2x1x32xf32> -> vector<2x8x32xf32>
    %6 = tpu.concatenate %3, %0, %5 in 2 : vector<2x8x32xf32>, vector<2x8x32xf32>, vector<2x8x32xf32> -> vector<2x8x96xf32>
    %7 = vector.shape_cast %6 : vector<2x8x96xf32> to vector<16x96xf32>
    %c0_2 = arith.constant 0 : index
    %c0_3 = arith.constant 0 : index
    %8 = vector.load %arg2[%c0_2, %c0_3] : memref<96x32xf32, #tpu.memory_space<vmem>>, vector<96x32xf32>
    %cst_4 = arith.constant dense<0.000000e+00> : vector<16x32xf32>
    %9 = tpu.matmul %7, %8, %cst_4 {dimension_numbers = #tpu.dot_dimension_numbers<[1], [0], [0], [1], [0, 0, 1, 1], [], []>} : vector<16x96xf32>, vector<96x32xf32>, vector<16x32xf32> -> vector<16x32xf32>
    %c0_5 = arith.constant 0 : index
    %c0_6 = arith.constant 0 : index
    %10 = vector.load %arg3[%c0_5, %c0_6] : memref<3x32xf32, #tpu.memory_space<vmem>>, vector<3x32xf32>
    %11 = vector.extract_strided_slice %10 {offsets = [0, 0], sizes = [1, 32], strides = [1, 1]} : vector<3x32xf32> to vector<1x32xf32>
    %12 = vector.broadcast %11 : vector<1x32xf32> to vector<16x32xf32>
    %13 = arith.addf %9, %12 : vector<16x32xf32>
    %cst_7 = arith.constant dense<0.000000e+00> : vector<16xf32>
    %14 = vector.multi_reduction <add>, %13, %cst_7 [1] : vector<16x32xf32> to vector<16xf32>
    %15 = vector.shape_cast %14 : vector<16xf32> to vector<16x1xf32>
    %cst_8 = arith.constant 3.200000e+01 : f32
    %16 = vector.broadcast %cst_8 : f32 to vector<16x1xf32>
    %17 = arith.divf %15, %16 : vector<16x1xf32>
    %18 = vector.broadcast %17 : vector<16x1xf32> to vector<16x32xf32>
    %19 = arith.subf %13, %18 : vector<16x32xf32>
    %20 = arith.mulf %19, %19 : vector<16x32xf32>
    %cst_9 = arith.constant dense<0.000000e+00> : vector<16xf32>
    %21 = vector.multi_reduction <add>, %20, %cst_9 [1] : vector<16x32xf32> to vector<16xf32>
    %22 = vector.shape_cast %21 : vector<16xf32> to vector<16x1xf32>
    %cst_10 = arith.constant 3.200000e+01 : f32
    %23 = vector.broadcast %cst_10 : f32 to vector<16x1xf32>
    %24 = arith.divf %22, %23 : vector<16x1xf32>
    %25 = vector.broadcast %17 : vector<16x1xf32> to vector<16x32xf32>
    %26 = arith.subf %13, %25 : vector<16x32xf32>
    %cst_11 = arith.constant 9.99999974E-6 : f32
    %27 = vector.broadcast %cst_11 : f32 to vector<16x1xf32>
    %28 = arith.addf %24, %27 : vector<16x1xf32>
    %29 = math.rsqrt %28 : vector<16x1xf32>
    %30 = vector.broadcast %29 : vector<16x1xf32> to vector<16x32xf32>
    %31 = arith.mulf %26, %30 : vector<16x32xf32>
    %32 = vector.extract_strided_slice %10 {offsets = [1, 0], sizes = [1, 32], strides = [1, 1]} : vector<3x32xf32> to vector<1x32xf32>
    %33 = vector.broadcast %32 : vector<1x32xf32> to vector<16x32xf32>
    %34 = arith.mulf %31, %33 : vector<16x32xf32>
    %35 = vector.extract_strided_slice %10 {offsets = [2, 0], sizes = [1, 32], strides = [1, 1]} : vector<3x32xf32> to vector<1x32xf32>
    %36 = vector.broadcast %35 : vector<1x32xf32> to vector<16x32xf32>
    %37 = arith.addf %34, %36 : vector<16x32xf32>
    %cst_12 = arith.constant 0.000000e+00 : f32
    %38 = vector.broadcast %cst_12 : f32 to vector<16x32xf32>
    %39 = arith.maximumf %37, %38 : vector<16x32xf32>
    %40 = vector.shape_cast %39 : vector<16x32xf32> to vector<2x8x32xf32>
    %cst_13 = arith.constant 0.000000e+00 : f32
    %41 = vector.broadcast %cst_13 : f32 to vector<2x1x32xf32>
    %42 = vector.extract_strided_slice %40 {offsets = [0, 0, 0], sizes = [2, 7, 32], strides = [1, 1, 1]} : vector<2x8x32xf32> to vector<2x7x32xf32>
    %43 = tpu.concatenate %41, %42 in 1 : vector<2x1x32xf32>, vector<2x7x32xf32> -> vector<2x8x32xf32>
    %44 = vector.extract_strided_slice %40 {offsets = [0, 1, 0], sizes = [2, 7, 32], strides = [1, 1, 1]} : vector<2x8x32xf32> to vector<2x7x32xf32>
    %45 = tpu.concatenate %44, %41 in 1 : vector<2x7x32xf32>, vector<2x1x32xf32> -> vector<2x8x32xf32>
    %46 = tpu.concatenate %43, %40, %45 in 2 : vector<2x8x32xf32>, vector<2x8x32xf32>, vector<2x8x32xf32> -> vector<2x8x96xf32>
    %47 = vector.shape_cast %46 : vector<2x8x96xf32> to vector<16x96xf32>
    %c0_14 = arith.constant 0 : index
    %c0_15 = arith.constant 0 : index
    %48 = vector.load %arg4[%c0_14, %c0_15] : memref<96x32xf32, #tpu.memory_space<vmem>>, vector<96x32xf32>
    %cst_16 = arith.constant dense<0.000000e+00> : vector<16x32xf32>
    %49 = tpu.matmul %47, %48, %cst_16 {dimension_numbers = #tpu.dot_dimension_numbers<[1], [0], [0], [1], [0, 0, 1, 1], [], []>} : vector<16x96xf32>, vector<96x32xf32>, vector<16x32xf32> -> vector<16x32xf32>
    %c0_17 = arith.constant 0 : index
    %c0_18 = arith.constant 0 : index
    %50 = vector.load %arg5[%c0_17, %c0_18] : memref<3x32xf32, #tpu.memory_space<vmem>>, vector<3x32xf32>
    %51 = vector.extract_strided_slice %50 {offsets = [0, 0], sizes = [1, 32], strides = [1, 1]} : vector<3x32xf32> to vector<1x32xf32>
    %52 = vector.broadcast %51 : vector<1x32xf32> to vector<16x32xf32>
    %53 = arith.addf %49, %52 : vector<16x32xf32>
    %cst_19 = arith.constant dense<0.000000e+00> : vector<16xf32>
    %54 = vector.multi_reduction <add>, %53, %cst_19 [1] : vector<16x32xf32> to vector<16xf32>
    %55 = vector.shape_cast %54 : vector<16xf32> to vector<16x1xf32>
    %cst_20 = arith.constant 3.200000e+01 : f32
    %56 = vector.broadcast %cst_20 : f32 to vector<16x1xf32>
    %57 = arith.divf %55, %56 : vector<16x1xf32>
    %58 = vector.broadcast %57 : vector<16x1xf32> to vector<16x32xf32>
    %59 = arith.subf %53, %58 : vector<16x32xf32>
    %60 = arith.mulf %59, %59 : vector<16x32xf32>
    %cst_21 = arith.constant dense<0.000000e+00> : vector<16xf32>
    %61 = vector.multi_reduction <add>, %60, %cst_21 [1] : vector<16x32xf32> to vector<16xf32>
    %62 = vector.shape_cast %61 : vector<16xf32> to vector<16x1xf32>
    %cst_22 = arith.constant 3.200000e+01 : f32
    %63 = vector.broadcast %cst_22 : f32 to vector<16x1xf32>
    %64 = arith.divf %62, %63 : vector<16x1xf32>
    %65 = vector.broadcast %57 : vector<16x1xf32> to vector<16x32xf32>
    %66 = arith.subf %53, %65 : vector<16x32xf32>
    %cst_23 = arith.constant 9.99999974E-6 : f32
    %67 = vector.broadcast %cst_23 : f32 to vector<16x1xf32>
    %68 = arith.addf %64, %67 : vector<16x1xf32>
    %69 = math.rsqrt %68 : vector<16x1xf32>
    %70 = vector.broadcast %69 : vector<16x1xf32> to vector<16x32xf32>
    %71 = arith.mulf %66, %70 : vector<16x32xf32>
    %72 = vector.extract_strided_slice %50 {offsets = [1, 0], sizes = [1, 32], strides = [1, 1]} : vector<3x32xf32> to vector<1x32xf32>
    %73 = vector.broadcast %72 : vector<1x32xf32> to vector<16x32xf32>
    %74 = arith.mulf %71, %73 : vector<16x32xf32>
    %75 = vector.extract_strided_slice %50 {offsets = [2, 0], sizes = [1, 32], strides = [1, 1]} : vector<3x32xf32> to vector<1x32xf32>
    %76 = vector.broadcast %75 : vector<1x32xf32> to vector<16x32xf32>
    %77 = arith.addf %74, %76 : vector<16x32xf32>
    %cst_24 = arith.constant 0.000000e+00 : f32
    %78 = vector.broadcast %cst_24 : f32 to vector<16x32xf32>
    %79 = arith.maximumf %77, %78 : vector<16x32xf32>
    %c0_25 = arith.constant 0 : index
    %c0_26 = arith.constant 0 : index
    %80 = vector.load %arg6[%c0_25, %c0_26] : memref<1x32xf32, #tpu.memory_space<vmem>>, vector<1x32xf32>
    %81 = vector.broadcast %80 : vector<1x32xf32> to vector<16x32xf32>
    %82 = arith.mulf %79, %81 : vector<16x32xf32>
    %cst_27 = arith.constant dense<0.000000e+00> : vector<16xf32>
    %83 = vector.multi_reduction <add>, %82, %cst_27 [1] : vector<16x32xf32> to vector<16xf32>
    %84 = vector.shape_cast %83 : vector<16xf32> to vector<16x1xf32>
    %c0_28 = arith.constant 0 : index
    %c0_29 = arith.constant 0 : index
    %85 = vector.load %arg7[%c0_28, %c0_29] : memref<1x1xf32, #tpu.memory_space<vmem>>, vector<1x1xf32>
    %86 = vector.broadcast %85 : vector<1x1xf32> to vector<16x1xf32>
    %87 = arith.addf %84, %86 : vector<16x1xf32>
    %cst_30 = arith.constant 0.000000e+00 : f32
    %88 = vector.broadcast %cst_30 : f32 to vector<16x1xf32>
    %89 = arith.maximumf %87, %88 : vector<16x1xf32>
    %90 = vector.shape_cast %89 : vector<16x1xf32> to vector<2x8x1xf32>
    %c0_31 = arith.constant 0 : index
    %c0_32 = arith.constant 0 : index
    %c0_33 = arith.constant 0 : index
    %91 = vector.load %arg8[%c0_31, %c0_32, %c0_33] : memref<2x8x1xf32, #tpu.memory_space<vmem>>, vector<2x8x1xf32>
    tpu.vector_store %arg8[%c0_31, %c0_32, %c0_33], %90 {strides = array<i32>} : memref<2x8x1xf32, #tpu.memory_space<vmem>>, vector<2x8x1xf32>,
    return
  }
  func.func @transform_0(%arg0: i32) -> (i32, i32, i32) {
    %c0_i32 = arith.constant 0 : i32
    %c0_i32_0 = arith.constant 0 : i32
    %c0_i32_1 = arith.constant 0 : i32
    %c0_i32_2 = arith.constant 0 : i32
    return %c0_i32, %c0_i32_0, %c0_i32_1 : i32, i32, i32
  }
  func.func @transform_1(%arg0: i32) -> (i32, i32) {
    %c0_i32 = arith.constant 0 : i32
    %c0_i32_0 = arith.constant 0 : i32
    %c0_i32_1 = arith.constant 0 : i32
    return %c0_i32, %c0_i32_0 : i32, i32
  }
  func.func @transform_2(%arg0: i32) -> (i32, i32) {
    %c0_i32 = arith.constant 0 : i32
    %c0_i32_0 = arith.constant 0 : i32
    %c0_i32_1 = arith.constant 0 : i32
    return %c0_i32, %c0_i32_0 : i32, i32
  }
  func.func @transform_3(%arg0: i32) -> (i32, i32) {
    %c0_i32 = arith.constant 0 : i32
    %c0_i32_0 = arith.constant 0 : i32
    %c0_i32_1 = arith.constant 0 : i32
    return %c0_i32, %c0_i32_0 : i32, i32
  }
  func.func @transform_4(%arg0: i32) -> (i32, i32) {
    %c0_i32 = arith.constant 0 : i32
    %c0_i32_0 = arith.constant 0 : i32
    %c0_i32_1 = arith.constant 0 : i32
    return %c0_i32, %c0_i32_0 : i32, i32
  }
  func.func @transform_5(%arg0: i32) -> (i32, i32) {
    %c0_i32 = arith.constant 0 : i32
    %c0_i32_0 = arith.constant 0 : i32
    %c0_i32_1 = arith.constant 0 : i32
    return %c0_i32, %c0_i32_0 : i32, i32
  }
  func.func @transform_6(%arg0: i32) -> (i32, i32) {
    %c0_i32 = arith.constant 0 : i32
    %c0_i32_0 = arith.constant 0 : i32
    %c0_i32_1 = arith.constant 0 : i32
    return %c0_i32, %c0_i32_0 : i32, i32
  }
  func.func @transform_7(%arg0: i32) -> (i32, i32, i32) {
    %c0_i32 = arith.constant 0 : i32
    %c0_i32_0 = arith.constant 0 : i32
    %c0_i32_1 = arith.constant 0 : i32
    %c0_i32_2 = arith.constant 0 : i32
    return %c0_i32, %c0_i32_0, %c0_i32_1 : i32, i32, i32
  }
}

</mosaic_0001>

<llo_original>
// kernel: tpu_custom_call.1
$region0: #{tpu_custom_call.1}
  #allocation0 [shape = 'u32[]', space=smem, size = 0x4, offset = 0x4, fixed_abs, tag = 'smem constant byte address 0x4 - core index']
  #allocation1 [shape = 'u32[144,128]{1,0:T(1,128)}', space=vmem, size = 0x12000, scoped, tag = 'internal scratch']
  #allocation2 [shape = 'f32[1,1]{1,0:T(1,128)S(1)}', space=vmem, size = 0x200, scoped, tag = 'scoped memory for tpu_custom_call.1']
  %s0 = inlined_call_operand.vmem [shape: f32[2,8,32], index: 0, kind: input, shape index: {}]
  %s1 = inlined_call_operand.vmem [shape: f32[96,32], index: 1, kind: input, shape index: {}]
  %s2 = inlined_call_operand.vmem [shape: f32[3,32], index: 2, kind: input, shape index: {}]
  %s3 = inlined_call_operand.vmem [shape: f32[96,32], index: 3, kind: input, shape index: {}]
  %s4 = inlined_call_operand.vmem [shape: f32[3,32], index: 4, kind: input, shape index: {}]
  %s5 = inlined_call_operand.vmem [shape: f32[1,32], index: 5, kind: input, shape index: {}]
  %s6 = inlined_call_operand.<no memory space> [shape: f32[1,1], index: 6, kind: input, shape index: {}]
  %s7 = inlined_call_operand.vmem [shape: f32[2,8,1], index: 7, kind: output, shape index: {}]
  %s8 = sld [smem:[#allocation0]]
  $region38: #{tpu_custom_call.1} parent=0
    _
  %s10 = ssub.s32 1, %s8
  %s11 = scalar_select 0, %s10, %s8
  %v12 = vstv %s6
  %13 = vst [vmem:[#allocation2] sm:$0x1] %v12
  // Predicated region
  $region2: #{tpu_custom_call.1} parent=0 // pred_check
    _
  $region3: #{tpu_custom_call.1} parent=0 // pred_check_branch
    %15 = sbr.rel (0) target = $region5
  $region4: #{tpu_custom_call.1} parent=0 // pred_region
    _
  $region5: #{tpu_custom_call.1} parent=0 // pred_fallthru
    _
  // Predicated region
  $region6: #{tpu_custom_call.1} parent=0 // pred_check
    _
  $region7: #{tpu_custom_call.1} parent=0 // pred_check_branch
    %17 = sbr.rel (0) target = $region9
  $region8: #{tpu_custom_call.1} parent=0 // pred_region
    _
  $region9: #{tpu_custom_call.1} parent=0 // pred_fallthru
    _
  // Predicated region
  $region10: #{tpu_custom_call.1} parent=0 // pred_check
    _
  $region11: #{tpu_custom_call.1} parent=0 // pred_check_branch
    %19 = sbr.rel (0) target = $region13
  $region12: #{tpu_custom_call.1} parent=0 // pred_region
    _
  $region13: #{tpu_custom_call.1} parent=0 // pred_fallthru
    _
  // Predicated region
  $region14: #{tpu_custom_call.1} parent=0 // pred_check
    _
  $region15: #{tpu_custom_call.1} parent=0 // pred_check_branch
    %21 = sbr.rel (0) target = $region17
  $region16: #{tpu_custom_call.1} parent=0 // pred_region
    _
  $region17: #{tpu_custom_call.1} parent=0 // pred_fallthru
    _
  // Predicated region
  $region18: #{tpu_custom_call.1} parent=0 // pred_check
    _
  $region19: #{tpu_custom_call.1} parent=0 // pred_check_branch
    %23 = sbr.rel (0) target = $region21
  $region20: #{tpu_custom_call.1} parent=0 // pred_region
    _
  $region21: #{tpu_custom_call.1} parent=0 // pred_fallthru
    _
  // Predicated region
  $region22: #{tpu_custom_call.1} parent=0 // pred_check
    _
  $region23: #{tpu_custom_call.1} parent=0 // pred_check_branch
    %25 = sbr.rel (0) target = $region25
  $region24: #{tpu_custom_call.1} parent=0 // pred_region
    _
  $region25: #{tpu_custom_call.1} parent=0 // pred_fallthru
    _
  // Predicated region
  $region26: #{tpu_custom_call.1} parent=0 // pred_check
    _
  $region27: #{tpu_custom_call.1} parent=0 // pred_check_branch
    %27 = sbr.rel (0) target = $region29
  $region28: #{tpu_custom_call.1} parent=0 // pred_region
    _
  $region29: #{tpu_custom_call.1} parent=0 // pred_fallthru
    _
  %v28 = vld [vmem:[%s0] sm:$0xff]
  %v29 = vld [vmem:[%s0 + $0x8] sm:$0xff]
  %v32 = vrot.slane %v28, 7
  %v33 = vrot.slane %v29, 7
  %vm36 = vcmask 1040384
  %v37 = vsel %vm36, 0.0, %v32
  %v38 = vsel %vm36, 0.0, %v33
  %v39 = vrot.slane %v28, 1
  %v40 = vrot.slane %v29, 1
  %vm43 = vcmask 1046528
  %v44 = vsel %vm43, %v39, 0.0
  %v45 = vsel %vm43, %v40, 0.0
  %46 = vrot.lane.b32.xlu0 %v28, 32
  %v47 = vpop.permute.xlu0 %46
  %48 = vrot.lane.b32.xlu0 %v29, 32
  %v49 = vpop.permute.xlu0 %48
  %54 = vrot.lane.b32.xlu0 %v44, 64
  %v55 = vpop.permute.xlu0 %54
  %56 = vrot.lane.b32.xlu0 %v45, 64
  %v57 = vpop.permute.xlu0 %56
  %vm60 = vcmask 261120
  %v61 = vsel %vm60, %v37, %v47
  %v62 = vsel %vm60, %v38, %v49
  %vm63 = vcmask 523264
  %v64 = vsel %vm63, %v61, %v55
  %v65 = vsel %vm63, %v62, %v57
  %v66 = vld [vmem:[%s1] sm:$0xff]
  %v67 = vld [vmem:[%s1 + $0x8] sm:$0xff]
  %v68 = vld [vmem:[%s1 + $0x10] sm:$0xff]
  %v69 = vld [vmem:[%s1 + $0x18] sm:$0xff]
  %v70 = vld [vmem:[%s1 + $0x20] sm:$0xff]
  %v71 = vld [vmem:[%s1 + $0x28] sm:$0xff]
  %v72 = vld [vmem:[%s1 + $0x30] sm:$0xff]
  %v73 = vld [vmem:[%s1 + $0x38] sm:$0xff]
  %v74 = vld [vmem:[%s1 + $0x40] sm:$0xff]
  %v75 = vld [vmem:[%s1 + $0x48] sm:$0xff]
  %v76 = vld [vmem:[%s1 + $0x50] sm:$0xff]
  %v77 = vld [vmem:[%s1 + $0x58] sm:$0xff]
  %v78 = vld [vmem:[%s2] sm:$0x7]
  %v79 = vlaneseq
  %v80 = vshrl.u32 %v79, 7
  %v81 = vsub.s32 0, %v80
  %v82 = vrot.slane %v78, %v81
  %vm83 = vcmask 785408
  %v85 = vsel %vm83, %v64, 0
  %v88 = vsel %vm83, %v65, 0
  %90 = vmatprep.subr.mxu0 0.0
  %91 = vmatpush1.msra.mxu0 %v66
  %92 = vmatprep.subr.mxu0 0.0
  %93 = vmatpush1.msra.mxu0 %v67
  %94 = vmatprep.subr.mxu0 0.0
  %95 = vmatpush1.msra.mxu0 %v68
  %96 = vmatprep.subr.mxu0 0.0
  %97 = vmatpush1.msra.mxu0 %v69
  %98 = vmatprep.subr.mxu0 0.0
  %99 = vmatpush1.msra.mxu0 %v70
  %100 = vmatprep.subr.mxu0 0.0
  %101 = vmatpush1.msra.mxu0 %v71
  %102 = vmatprep.subr.mxu0 0.0
  %103 = vmatpush1.msra.mxu0 %v72
  %104 = vmatprep.subr.mxu0 0.0
  %105 = vmatpush1.msra.mxu0 %v73
  %106 = vmatprep.subr.mxu0 0.0
  %107 = vmatpush1.msra.mxu0 %v74
  %108 = vmatprep.subr.mxu0 0.0
  %109 = vmatpush1.msra.mxu0 %v75
  %110 = vmatprep.subr.mxu0 0.0
  %111 = vmatpush1.msra.mxu0 %v76
  %112 = vmatprep.subr.mxu0 0.0
  %113 = vmatpush1.msra.mxu0 %v77
  %114 = vmatprep.subr.mxu0 0.0
  %115 = vmatpush1.msra.mxu0 0.0
  %116 = vmatprep.subr.mxu0 0.0
  %117 = vmatpush1.msra.mxu0 0.0
  %118 = vmatprep.subr.mxu0 0.0
  %119 = vmatpush1.msra.mxu0 0.0
  %120 = vmatprep.subr.mxu0 0.0
  %121 = vmatpush1.msra.mxu0 0.0
  %122 = vmatprep.subr.mxu0 0.0
  %123 = vmatpush1.msra.mxu0 0.0
  %124 = vmatprep.subr.mxu0 0.0
  %125 = vmatpush1.msra.mxu0 0.0
  %126 = vmatprep.subr.mxu0 0.0
  %127 = vmatpush1.msra.mxu0 0.0
  %128 = vmatprep.subr.mxu0 0.0
  %129 = vmatpush1.msra.mxu0 0.0
  %130 = vmatprep.subr.mxu0 0.0
  %131 = vmatpush1.msra.mxu0 0.0
  %132 = vmatprep.subr.mxu0 0.0
  %133 = vmatpush1.msra.mxu0 0.0
  %134 = vmatprep.subr.mxu0 0.0
  %135 = vmatpush1.msra.mxu0 0.0
  %136 = vmatprep.subr.mxu0 0.0
  %137 = vmatpush1.msra.mxu0 0.0
  %138 = vmatprep.subr.mxu0 0.0
  %139 = vmatpush1.msra.mxu0 0.0
  %140 = vmatprep.subr.mxu0 0.0
  %141 = vmatpush1.msra.mxu0 0.0
  %142 = vmatprep.subr.mxu0 0.0
  %143 = vmatpush1.msra.mxu0 0.0
  %144 = vmatprep.subr.mxu0 0.0
  %145 = vmatpush1.msra.mxu0 0.0
  %146 = vmatprep.subr.mxu0 0.0
  %147 = vmatpush1.msra.mxu0 0.0
  %148 = vmatprep.subr.mxu0 0.0
  %149 = vmatpush1.msra.mxu0 0.0
  %150 = vmatprep.subr.mxu0 0.0
  %151 = vmatpush1.msra.mxu0 0.0
  %152 = vmatprep.subr.mxu0 0.0
  %153 = vmatpush1.msra.mxu0 0.0
  %154 = vmatprep.mubr.f32.mxu0 0.0
  %155 = vmatmul.mubr.f32.gmra.mrb[0].mxu0 %v85
  %v156 = vpop.f32.mrb[0].mxu0
  %v157 = vadd.f32 %v82, %v156
  %v158 = vpop.f32.mrb[0].mxu0
  %159 = vmatprep.mubr.f32.mxu0 0.0
  %160 = vmatmul.mubr.f32.gmra.mrb[0].mxu0 %v88
  %v161 = vpop.f32.mrb[0].mxu0
  %v162 = vadd.f32 %v82, %v161
  %v163 = vpop.f32.mrb[0].mxu0
  %164 = vdwg.mxu0
  %v165 = vsel %vm60, %v157, 0.0
  %166 = vadd.xlane.f32.xlu0 %v165
  %v167 = vpop.xlane.xlu0 %166
  %v168 = vsel %vm60, %v162, 0.0
  %169 = vadd.xlane.f32.xlu0 %v168
  %v170 = vpop.xlane.xlu0 %169
  %v171 = vrcp.pop 32.0
  %v172 = vmul.f32 %v167, %v171
  %v173 = vmul.f32 %v170, %v171
  %v174 = vsub.f32 %v157, %v172
  %v175 = vsub.f32 %v162, %v173
  %v176 = vmul.f32 %v174, %v174
  %v177 = vmul.f32 %v175, %v175
  %v178 = vsel %vm60, %v176, 0.0
  %179 = vadd.xlane.f32.xlu0 %v178
  %v180 = vpop.xlane.xlu0 %179
  %v181 = vsel %vm60, %v177, 0.0
  %182 = vadd.xlane.f32.xlu0 %v181
  %v183 = vpop.xlane.xlu0 %182
  %v184 = vmul.f32 %v180, %v171
  %v185 = vmul.f32 %v183, %v171
  %v186 = vadd.f32 %v184, 1e-05
  %v187 = vadd.f32 %v185, 1e-05
  %v188 = vrsqrt.pop %v186
  %v189 = vrsqrt.pop %v187
  %v190 = vmul.f32 %v174, %v188
  %v191 = vmul.f32 %v175, %v189
  %v192 = vlaneseq
  %v193 = vshrl.u32 %v192, 7
  %v194 = vsub.s32 1, %v193
  %v195 = vrot.slane %v78, %v194
  %v196 = vmul.f32 %v190, %v195
  %v197 = vmul.f32 %v191, %v195
  %v198 = vlaneseq
  %v199 = vshrl.u32 %v198, 7
  %v200 = vsub.s32 2, %v199
  %v201 = vrot.slane %v78, %v200
  %v202 = vadd.f32 %v196, %v201
  %v203 = vadd.f32 %v197, %v201
  %v204 = vmax.f32 %v202, 0.0
  %v205 = vmax.f32 %v203, 0.0
  %v208 = vrot.slane %v204, 7
  %v209 = vrot.slane %v205, 7
  %v212 = vsel %vm36, 0.0, %v208
  %v213 = vsel %vm36, 0.0, %v209
  %v214 = vrot.slane %v204, 1
  %v215 = vrot.slane %v205, 1
  %v218 = vsel %vm43, %v214, 0.0
  %v219 = vsel %vm43, %v215, 0.0
  %220 = vrot.lane.b32.xlu0 %v204, 32
  %v221 = vpop.permute.xlu0 %220
  %222 = vrot.lane.b32.xlu0 %v205, 32
  %v223 = vpop.permute.xlu0 %222
  %228 = vrot.lane.b32.xlu0 %v218, 64
  %v229 = vpop.permute.xlu0 %228
  %230 = vrot.lane.b32.xlu0 %v219, 64
  %v231 = vpop.permute.xlu0 %230
  %v234 = vsel %vm60, %v212, %v221
  %v235 = vsel %vm60, %v213, %v223
  %v236 = vsel %vm63, %v234, %v229
  %v237 = vsel %vm63, %v235, %v231
  %v238 = vld [vmem:[%s3] sm:$0xff]
  %v239 = vld [vmem:[%s3 + $0x8] sm:$0xff]
  %v240 = vld [vmem:[%s3 + $0x10] sm:$0xff]
  %v241 = vld [vmem:[%s3 + $0x18] sm:$0xff]
  %v242 = vld [vmem:[%s3 + $0x20] sm:$0xff]
  %v243 = vld [vmem:[%s3 + $0x28] sm:$0xff]
  %v244 = vld [vmem:[%s3 + $0x30] sm:$0xff]
  %v245 = vld [vmem:[%s3 + $0x38] sm:$0xff]
  %v246 = vld [vmem:[%s3 + $0x40] sm:$0xff]
  %v247 = vld [vmem:[%s3 + $0x48] sm:$0xff]
  %v248 = vld [vmem:[%s3 + $0x50] sm:$0xff]
  %v249 = vld [vmem:[%s3 + $0x58] sm:$0xff]
  %v250 = vld [vmem:[%s4] sm:$0x7]
  %v251 = vlaneseq
  %v252 = vshrl.u32 %v251, 7
  %v253 = vsub.s32 0, %v252
  %v254 = vrot.slane %v250, %v253
  %v256 = vsel %vm83, %v236, 0
  %v259 = vsel %vm83, %v237, 0
  %261 = vmatprep.subr.mxu0 0.0
  %262 = vmatpush1.msra.mxu0 %v238
  %263 = vmatprep.subr.mxu0 0.0
  %264 = vmatpush1.msra.mxu0 %v239
  %265 = vmatprep.subr.mxu0 0.0
  %266 = vmatpush1.msra.mxu0 %v240
  %267 = vmatprep.subr.mxu0 0.0
  %268 = vmatpush1.msra.mxu0 %v241
  %269 = vmatprep.subr.mxu0 0.0
  %270 = vmatpush1.msra.mxu0 %v242
  %271 = vmatprep.subr.mxu0 0.0
  %272 = vmatpush1.msra.mxu0 %v243
  %273 = vmatprep.subr.mxu0 0.0
  %274 = vmatpush1.msra.mxu0 %v244
  %275 = vmatprep.subr.mxu0 0.0
  %276 = vmatpush1.msra.mxu0 %v245
  %277 = vmatprep.subr.mxu0 0.0
  %278 = vmatpush1.msra.mxu0 %v246
  %279 = vmatprep.subr.mxu0 0.0
  %280 = vmatpush1.msra.mxu0 %v247
  %281 = vmatprep.subr.mxu0 0.0
  %282 = vmatpush1.msra.mxu0 %v248
  %283 = vmatprep.subr.mxu0 0.0
  %284 = vmatpush1.msra.mxu0 %v249
  %285 = vmatprep.subr.mxu0 0.0
  %286 = vmatpush1.msra.mxu0 0.0
  %287 = vmatprep.subr.mxu0 0.0
  %288 = vmatpush1.msra.mxu0 0.0
  %289 = vmatprep.subr.mxu0 0.0
  %290 = vmatpush1.msra.mxu0 0.0
  %291 = vmatprep.subr.mxu0 0.0
  %292 = vmatpush1.msra.mxu0 0.0
  %293 = vmatprep.subr.mxu0 0.0
  %294 = vmatpush1.msra.mxu0 0.0
  %295 = vmatprep.subr.mxu0 0.0
  %296 = vmatpush1.msra.mxu0 0.0
  %297 = vmatprep.subr.mxu0 0.0
  %298 = vmatpush1.msra.mxu0 0.0
  %299 = vmatprep.subr.mxu0 0.0
  %300 = vmatpush1.msra.mxu0 0.0
  %301 = vmatprep.subr.mxu0 0.0
  %302 = vmatpush1.msra.mxu0 0.0
  %303 = vmatprep.subr.mxu0 0.0
  %304 = vmatpush1.msra.mxu0 0.0
  %305 = vmatprep.subr.mxu0 0.0
  %306 = vmatpush1.msra.mxu0 0.0
  %307 = vmatprep.subr.mxu0 0.0
  %308 = vmatpush1.msra.mxu0 0.0
  %309 = vmatprep.subr.mxu0 0.0
  %310 = vmatpush1.msra.mxu0 0.0
  %311 = vmatprep.subr.mxu0 0.0
  %312 = vmatpush1.msra.mxu0 0.0
  %313 = vmatprep.subr.mxu0 0.0
  %314 = vmatpush1.msra.mxu0 0.0
  %315 = vmatprep.subr.mxu0 0.0
  %316 = vmatpush1.msra.mxu0 0.0
  %317 = vmatprep.subr.mxu0 0.0
  %318 = vmatpush1.msra.mxu0 0.0
  %319 = vmatprep.subr.mxu0 0.0
  %320 = vmatpush1.msra.mxu0 0.0
  %321 = vmatprep.subr.mxu0 0.0
  %322 = vmatpush1.msra.mxu0 0.0
  %323 = vmatprep.subr.mxu0 0.0
  %324 = vmatpush1.msra.mxu0 0.0
  %325 = vmatprep.mubr.f32.mxu0 0.0
  %326 = vmatmul.mubr.f32.gmra.mrb[0].mxu0 %v256
  %v327 = vpop.f32.mrb[0].mxu0
  %v328 = vadd.f32 %v254, %v327
  %v329 = vpop.f32.mrb[0].mxu0
  %330 = vmatprep.mubr.f32.mxu0 0.0
  %331 = vmatmul.mubr.f32.gmra.mrb[0].mxu0 %v259
  %v332 = vpop.f32.mrb[0].mxu0
  %v333 = vadd.f32 %v254, %v332
  %v334 = vpop.f32.mrb[0].mxu0
  %335 = vdwg.mxu0
  %v336 = vsel %vm60, %v328, 0.0
  %337 = vadd.xlane.f32.xlu0 %v336
  %v338 = vpop.xlane.xlu0 %337
  %v339 = vsel %vm60, %v333, 0.0
  %340 = vadd.xlane.f32.xlu0 %v339
  %v341 = vpop.xlane.xlu0 %340
  %v342 = vmul.f32 %v338, %v171
  %v343 = vmul.f32 %v341, %v171
  %v344 = vsub.f32 %v328, %v342
  %v345 = vsub.f32 %v333, %v343
  %v346 = vmul.f32 %v344, %v344
  %v347 = vmul.f32 %v345, %v345
  %v348 = vsel %vm60, %v346, 0.0
  %349 = vadd.xlane.f32.xlu0 %v348
  %v350 = vpop.xlane.xlu0 %349
  %v351 = vsel %vm60, %v347, 0.0
  %352 = vadd.xlane.f32.xlu0 %v351
  %v353 = vpop.xlane.xlu0 %352
  %v354 = vmul.f32 %v350, %v171
  %v355 = vmul.f32 %v353, %v171
  %v356 = vadd.f32 %v354, 1e-05
  %v357 = vadd.f32 %v355, 1e-05
  %v358 = vrsqrt.pop %v356
  %v359 = vrsqrt.pop %v357
  %v360 = vmul.f32 %v344, %v358
  %v361 = vmul.f32 %v345, %v359
  %v362 = vlaneseq
  %v363 = vshrl.u32 %v362, 7
  %v364 = vsub.s32 1, %v363
  %v365 = vrot.slane %v250, %v364
  %v366 = vmul.f32 %v360, %v365
  %v367 = vmul.f32 %v361, %v365
  %v368 = vlaneseq
  %v369 = vshrl.u32 %v368, 7
  %v370 = vsub.s32 2, %v369
  %v371 = vrot.slane %v250, %v370
  %v372 = vadd.f32 %v366, %v371
  %v373 = vadd.f32 %v367, %v371
  %v374 = vmax.f32 %v372, 0.0
  %v375 = vmax.f32 %v373, 0.0
  %v376 = vld [vmem:[%s5] sm:$0x1]
  %v378 = vlaneseq
  %v379 = vshrl.u32 %v378, 7
  %v380 = vsub.s32 0, %v379
  %v381 = vrot.slane %v376, %v380
  %v383 = vmul.f32 %v374, %v381
  %v384 = vmul.f32 %v375, %v381
  %v385 = vsel %vm60, %v383, 0.0
  %386 = vadd.xlane.f32.xlu0 %v385
  %v387 = vpop.xlane.xlu0 %386
  %v388 = vsel %vm60, %v384, 0.0
  %389 = vadd.xlane.f32.xlu0 %v388
  %v390 = vpop.xlane.xlu0 %389
  %v391 = vld [vmem:[#allocation2] sm:$0x1]
  %v393 = vlaneseq
  %v394 = vshrl.u32 %v393, 7
  %v395 = vsub.s32 0, %v394
  %v396 = vrot.slane %v391, %v395
  %v398 = vadd.f32 %v387, %v396
  %v399 = vadd.f32 %v390, %v396
  %v400 = vmax.f32 %v398, 0.0
  %v401 = vmax.f32 %v399, 0.0
  %vm402 = vcmask 7168
  %403 = vst.msk [vmem:[%s7] sm:$0xff] %vm402, %v400
  %404 = vst.msk [vmem:[%s7 + $0x8] sm:$0xff] %vm402, %v401
  // Predicated region
  $region30: #{tpu_custom_call.1} parent=0 // pred_check
    _
  $region31: #{tpu_custom_call.1} parent=0 // pred_check_branch
    %406 = sbr.rel (0) target = $region33
  $region32: #{tpu_custom_call.1} parent=0 // pred_region
    _
  $region33: #{tpu_custom_call.1} parent=0 // pred_fallthru
    _
  // Predicated region
  $region34: #{tpu_custom_call.1} parent=0 // pred_check
    _
  $region35: #{tpu_custom_call.1} parent=0 // pred_check_branch
    %408 = sbr.rel (0) target = $region37
  $region36: #{tpu_custom_call.1} parent=0 // pred_region
    _
  $region37: #{tpu_custom_call.1} parent=0 // pred_fallthru
    _

</llo_original>
